<compile_context>
chip_gen: v5e
topology: v5e:2x2
jax: 0.10.0
libtpu: 0.0.40
codegen_flags: <defaults>
</compile_context>

<pallas_src>
import jax
import jax.numpy as jnp
from jax.experimental import pallas as pl
from jax.experimental.pallas import tpu as pltpu

# ---- problem sizes (small, consistent with the module) ----------------------
N, C, H, W = 2, 4, 16, 16          # input batch, channels, spatial
K = C * H * W                       # flattened input dim = 1024
LATENT = 32                         # encode() keeps first half of 2*LATENT channels
ENC_OUT = 2 * LATENT                # encoder output channels = 64
HID = 128                           # decoder hidden width


def ae_kernel(x_ref, we_ref, be_ref, wd1_ref, bd1_ref, wd2_ref, bd2_ref, out_ref):
    # x_ref:   (TM, K)      bf16 flattened NCHW input tile
    # we_ref:  (K, LATENT)  bf16 encoder weight, pre-sliced to the kept half
    # be_ref:  (1, LATENT)  f32 encoder bias (kept half)
    # wd1_ref: (LATENT,HID) bf16 / bd1_ref: (1, HID) f32
    # wd2_ref: (HID, K)     bf16 / bd2_ref: (1, K)   f32
    cdt = wd1_ref.dtype

    x = x_ref[...]

    # --- encoder + AE.encode: full-spatial conv == matmul; the half-channel
    #     slice is already folded into we/be in the wrapper ---
    z = jnp.dot(x, we_ref[...], preferred_element_type=jnp.float32) + be_ref[...]

    # --- decoder: Linear -> ReLU -> Linear (f32 accumulation, bf16 operands) ---
    h = jnp.dot(z.astype(cdt), wd1_ref[...],
                preferred_element_type=jnp.float32) + bd1_ref[...]
    h = jnp.maximum(h, 0.0)
    recon = jnp.dot(h.astype(cdt), wd2_ref[...],
                    preferred_element_type=jnp.float32) + bd2_ref[...]

    out_ref[...] = recon.astype(out_ref.dtype)


def ae_forward(x_nchw, params):
    """Run the AE forward pass. x_nchw: (N, C, H, W) float32 -> (N, C, H, W) float32."""
    n = x_nchw.shape[0]
    we_full, be_full, wd1, bd1, wd2, bd2 = params

    # AE.encode keeps only the first half of the encoder channels: fold that
    # slice into the params so the discarded half is never loaded or computed.
    we = we_full[:, :LATENT].astype(jnp.bfloat16)
    be = be_full[:, :LATENT].astype(jnp.float32)
    wd1_b = wd1.astype(jnp.bfloat16)
    wd2_b = wd2.astype(jnp.bfloat16)
    bd1_f = bd1.astype(jnp.float32)
    bd2_f = bd2.astype(jnp.float32)

    # Flatten NCHW row-major (matches torch .view / conv-as-matmul) and cast to
    # bf16 once in the wrapper (not per grid step).
    x_flat = x_nchw.reshape(n, -1).astype(jnp.bfloat16)

    # Batch tile: multiple of 8 sublanes, up to 128 rows per MXU pass.
    tm = min(128, max(8, ((n + 7) // 8) * 8))
    n_pad = ((n + tm - 1) // tm) * tm
    if n_pad != n:
        x_flat = jnp.pad(x_flat, ((0, n_pad - n), (0, 0)))

    grid = (n_pad // tm,)

    flops = 2 * n_pad * (K * LATENT + LATENT * HID + HID * K)
    bytes_accessed = (
        x_flat.size * 2                                   # bf16 input
        + we.size * 2 + wd1_b.size * 2 + wd2_b.size * 2   # bf16 weights
        + be.size * 4 + bd1_f.size * 4 + bd2_f.size * 4   # f32 biases
        + n_pad * K * 4                                   # f32 output
    )
    cost = pl.CostEstimate(flops=flops, transcendentals=0,
                           bytes_accessed=bytes_accessed)

    recon_flat = pl.pallas_call(
        ae_kernel,
        out_shape=jax.ShapeDtypeStruct((n_pad, K), jnp.float32),
        grid=grid,
        in_specs=[
            pl.BlockSpec((tm, K), lambda i: (i, 0)),          # x: tiled over batch
            pl.BlockSpec((K, LATENT), lambda i: (0, 0)),      # weights resident
            pl.BlockSpec((1, LATENT), lambda i: (0, 0)),
            pl.BlockSpec((LATENT, HID), lambda i: (0, 0)),
            pl.BlockSpec((1, HID), lambda i: (0, 0)),
            pl.BlockSpec((HID, K), lambda i: (0, 0)),
            pl.BlockSpec((1, K), lambda i: (0, 0)),
        ],
        out_specs=pl.BlockSpec((tm, K), lambda i: (i, 0)),
        compiler_params=pltpu.CompilerParams(
            dimension_semantics=("parallel",)),
        cost_estimate=cost,
    )(x_flat, we, be, wd1_b, bd1_f, wd2_b, bd2_f)

    return recon_flat[:n].reshape(n, C, H, W)


def init_params(key):
    k1, k2, k3 = jax.random.split(key, 3)
    # Encoder Conv2d(C, 2*LATENT, kernel=(H, W)) — stored pre-flattened as (K, ENC_OUT).
    we = jax.random.normal(k1, (K, ENC_OUT), jnp.float32) * (1.0 / jnp.sqrt(K))
    be = jnp.zeros((1, ENC_OUT), jnp.float32)
    # Decoder Linear(LATENT, HID)
    wd1 = jax.random.normal(k2, (LATENT, HID), jnp.float32) * (1.0 / jnp.sqrt(LATENT))
    bd1 = jnp.zeros((1, HID), jnp.float32)
    # Decoder Linear(HID, K)
    wd2 = jax.random.normal(k3, (HID, K), jnp.float32) * (1.0 / jnp.sqrt(HID))
    bd2 = jnp.zeros((1, K), jnp.float32)
    return we, be, wd1, bd1, wd2, bd2


if __name__ == "__main__":
    key = jax.random.PRNGKey(0)
    kx, kp = jax.random.split(key)
    x = jax.random.normal(kx, (N, C, H, W), jnp.float32)
    params = init_params(kp)

    recon = ae_forward(x, params)
    jax.block_until_ready(recon)

    # sanity: reference in plain JAX with the same bf16 operand casts and f32
    # accumulation that the kernel uses (bf16 is the intended perf change).
    we_full, be_full, wd1, bd1, wd2, bd2 = params
    x_flat = x.reshape(N, -1)
    xb = x_flat.astype(jnp.bfloat16).astype(jnp.float32)
    web = we_full[:, :LATENT].astype(jnp.bfloat16).astype(jnp.float32)
    wd1b = wd1.astype(jnp.bfloat16).astype(jnp.float32)
    wd2b = wd2.astype(jnp.bfloat16).astype(jnp.float32)

    z = xb @ web + be_full[:, :LATENT]
    h = jnp.maximum(z.astype(jnp.bfloat16).astype(jnp.float32) @ wd1b + bd1, 0.0)
    ref = (h.astype(jnp.bfloat16).astype(jnp.float32) @ wd2b + bd2).reshape(N, C, H, W)

    assert recon.shape == (N, C, H, W)
    assert jnp.allclose(recon, ref, atol=5e-2, rtol=5e-2)

    print("KERNEL_OK")
</pallas_src>

<mosaic_0001>
module attributes {stable_mosaic.version = 11 : i64} {
  func.func @ae_kernel(%arg0: i32, %arg1: memref<8x1024xbf16, #tpu.memory_space<vmem>>, %arg2: memref<1024x32xbf16, #tpu.memory_space<vmem>>, %arg3: memref<1x32xf32, #tpu.memory_space<vmem>>, %arg4: memref<32x128xbf16, #tpu.memory_space<vmem>>, %arg5: memref<1x128xf32, #tpu.memory_space<vmem>>, %arg6: memref<128x1024xbf16, #tpu.memory_space<vmem>>, %arg7: memref<1x1024xf32, #tpu.memory_space<vmem>>, %arg8: memref<8x1024xf32, #tpu.memory_space<vmem>>) attributes {dimension_semantics = [#tpu.dimension_semantics<parallel>], iteration_bounds = array<i64: 1>, scalar_prefetch = 0 : i64, scratch_operands = 0 : i64, tpu.core_type = #tpu.core_type<tc>, window_params = [{transform_indices = @transform_0, window_bounds = array<i64: 8, 1024>}, {pipeline_mode = #tpu.pipeline_mode<synchronous>, transform_indices = @transform_1, window_bounds = array<i64: 1024, 32>}, {pipeline_mode = #tpu.pipeline_mode<synchronous>, transform_indices = @transform_2, window_bounds = array<i64: 1, 32>}, {pipeline_mode = #tpu.pipeline_mode<synchronous>, transform_indices = @transform_3, window_bounds = array<i64: 32, 128>}, {pipeline_mode = #tpu.pipeline_mode<synchronous>, transform_indices = @transform_4, window_bounds = array<i64: 1, 128>}, {pipeline_mode = #tpu.pipeline_mode<synchronous>, transform_indices = @transform_5, window_bounds = array<i64: 128, 1024>}, {pipeline_mode = #tpu.pipeline_mode<synchronous>, transform_indices = @transform_6, window_bounds = array<i64: 1, 1024>}, {transform_indices = @transform_7, window_bounds = array<i64: 8, 1024>}]} {
    %c0 = arith.constant 0 : index
    %c0_0 = arith.constant 0 : index
    %0 = vector.load %arg1[%c0, %c0_0] : memref<8x1024xbf16, #tpu.memory_space<vmem>>, vector<8x1024xbf16>
    %c0_1 = arith.constant 0 : index
    %c0_2 = arith.constant 0 : index
    %1 = vector.load %arg2[%c0_1, %c0_2] : memref<1024x32xbf16, #tpu.memory_space<vmem>>, vector<1024x32xbf16>
    %cst = arith.constant dense<0.000000e+00> : vector<8x32xf32>
    %2 = tpu.matmul %0, %1, %cst {dimension_numbers = #tpu.dot_dimension_numbers<[1], [0], [0], [1], [0, 0, 1, 1], [], []>} : vector<8x1024xbf16>, vector<1024x32xbf16>, vector<8x32xf32> -> vector<8x32xf32>
    %c0_3 = arith.constant 0 : index
    %c0_4 = arith.constant 0 : index
    %3 = vector.load %arg3[%c0_3, %c0_4] : memref<1x32xf32, #tpu.memory_space<vmem>>, vector<1x32xf32>
    %4 = vector.broadcast %3 : vector<1x32xf32> to vector<8x32xf32>
    %5 = arith.addf %2, %4 : vector<8x32xf32>
    %6 = arith.truncf %5 : vector<8x32xf32> to vector<8x32xbf16>
    %c0_5 = arith.constant 0 : index
    %c0_6 = arith.constant 0 : index
    %7 = vector.load %arg4[%c0_5, %c0_6] : memref<32x128xbf16, #tpu.memory_space<vmem>>, vector<32x128xbf16>
    %cst_7 = arith.constant dense<0.000000e+00> : vector<8x128xf32>
    %8 = tpu.matmul %6, %7, %cst_7 {dimension_numbers = #tpu.dot_dimension_numbers<[1], [0], [0], [1], [0, 0, 1, 1], [], []>} : vector<8x32xbf16>, vector<32x128xbf16>, vector<8x128xf32> -> vector<8x128xf32>
    %c0_8 = arith.constant 0 : index
    %c0_9 = arith.constant 0 : index
    %9 = vector.load %arg5[%c0_8, %c0_9] : memref<1x128xf32, #tpu.memory_space<vmem>>, vector<1x128xf32>
    %10 = vector.broadcast %9 : vector<1x128xf32> to vector<8x128xf32>
    %11 = arith.addf %8, %10 : vector<8x128xf32>
    %cst_10 = arith.constant 0.000000e+00 : f32
    %12 = vector.broadcast %cst_10 : f32 to vector<8x128xf32>
    %13 = arith.maximumf %11, %12 : vector<8x128xf32>
    %14 = arith.truncf %13 : vector<8x128xf32> to vector<8x128xbf16>
    %c0_11 = arith.constant 0 : index
    %c0_12 = arith.constant 0 : index
    %15 = vector.load %arg6[%c0_11, %c0_12] : memref<128x1024xbf16, #tpu.memory_space<vmem>>, vector<128x1024xbf16>
    %cst_13 = arith.constant dense<0.000000e+00> : vector<8x1024xf32>
    %16 = tpu.matmul %14, %15, %cst_13 {dimension_numbers = #tpu.dot_dimension_numbers<[1], [0], [0], [1], [0, 0, 1, 1], [], []>} : vector<8x128xbf16>, vector<128x1024xbf16>, vector<8x1024xf32> -> vector<8x1024xf32>
    %c0_14 = arith.constant 0 : index
    %c0_15 = arith.constant 0 : index
    %17 = vector.load %arg7[%c0_14, %c0_15] : memref<1x1024xf32, #tpu.memory_space<vmem>>, vector<1x1024xf32>
    %18 = vector.broadcast %17 : vector<1x1024xf32> to vector<8x1024xf32>
    %19 = arith.addf %16, %18 : vector<8x1024xf32>
    %c0_16 = arith.constant 0 : index
    %c0_17 = arith.constant 0 : index
    %20 = vector.load %arg8[%c0_16, %c0_17] : memref<8x1024xf32, #tpu.memory_space<vmem>>, vector<8x1024xf32>
    tpu.vector_store %arg8[%c0_16, %c0_17], %19 {strides = array<i32>} : memref<8x1024xf32, #tpu.memory_space<vmem>>, vector<8x1024xf32>,
    return
  }
  func.func @transform_0(%arg0: i32) -> (i32, i32) {
    %c0_i32 = arith.constant 0 : i32
    %c0_i32_0 = arith.constant 0 : i32
    return %arg0, %c0_i32 : i32, i32
  }
  func.func @transform_1(%arg0: i32) -> (i32, i32) {
    %c0_i32 = arith.constant 0 : i32
    %c0_i32_0 = arith.constant 0 : i32
    %c0_i32_1 = arith.constant 0 : i32
    return %c0_i32, %c0_i32_0 : i32, i32
  }
  func.func @transform_2(%arg0: i32) -> (i32, i32) {
    %c0_i32 = arith.constant 0 : i32
    %c0_i32_0 = arith.constant 0 : i32
    %c0_i32_1 = arith.constant 0 : i32
    return %c0_i32, %c0_i32_0 : i32, i32
  }
  func.func @transform_3(%arg0: i32) -> (i32, i32) {
    %c0_i32 = arith.constant 0 : i32
    %c0_i32_0 = arith.constant 0 : i32
    %c0_i32_1 = arith.constant 0 : i32
    return %c0_i32, %c0_i32_0 : i32, i32
  }
  func.func @transform_4(%arg0: i32) -> (i32, i32) {
    %c0_i32 = arith.constant 0 : i32
    %c0_i32_0 = arith.constant 0 : i32
    %c0_i32_1 = arith.constant 0 : i32
    return %c0_i32, %c0_i32_0 : i32, i32
  }
  func.func @transform_5(%arg0: i32) -> (i32, i32) {
    %c0_i32 = arith.constant 0 : i32
    %c0_i32_0 = arith.constant 0 : i32
    %c0_i32_1 = arith.constant 0 : i32
    return %c0_i32, %c0_i32_0 : i32, i32
  }
  func.func @transform_6(%arg0: i32) -> (i32, i32) {
    %c0_i32 = arith.constant 0 : i32
    %c0_i32_0 = arith.constant 0 : i32
    %c0_i32_1 = arith.constant 0 : i32
    return %c0_i32, %c0_i32_0 : i32, i32
  }
  func.func @transform_7(%arg0: i32) -> (i32, i32) {
    %c0_i32 = arith.constant 0 : i32
    %c0_i32_0 = arith.constant 0 : i32
    return %arg0, %c0_i32 : i32, i32
  }
}

</mosaic_0001>

<llo_original>
// kernel: tpu_custom_call.1
$region0: #{tpu_custom_call.1}
  #allocation0 [shape = 'u32[]', space=smem, size = 0x4, offset = 0x4, fixed_abs, tag = 'smem constant byte address 0x4 - core index']
  #allocation1 [shape = 'u32[72,128]{1,0:T(1,128)}', space=vmem, size = 0x9000, scoped, tag = 'internal scratch']
  %s0 = inlined_call_operand.vmem [shape: bf16[8,1024], index: 0, kind: input, shape index: {}]
  %s1 = inlined_call_operand.vmem [shape: bf16[1024,32], index: 1, kind: input, shape index: {}]
  %s2 = inlined_call_operand.vmem [shape: f32[1,32], index: 2, kind: input, shape index: {}]
  %s3 = inlined_call_operand.vmem [shape: bf16[32,128], index: 3, kind: input, shape index: {}]
  %s4 = inlined_call_operand.vmem [shape: f32[1,128], index: 4, kind: input, shape index: {}]
  %s5 = inlined_call_operand.vmem [shape: bf16[128,1024], index: 5, kind: input, shape index: {}]
  %s6 = inlined_call_operand.vmem [shape: f32[1,1024], index: 6, kind: input, shape index: {}]
  %s7 = inlined_call_operand.hbm [shape: f32[8,1024], index: 7, kind: output, shape index: {}]
  %s8 = sld [smem:[#allocation0]]
  $region38: #{tpu_custom_call.1} parent=0
    _
  %s10 = ssub.s32 1, %s8
  %s11 = scalar_select 0, %s10, %s8
  $region1: #{tpu_custom_call.1} parent=0
    #allocation2 [shape = 'u8[32768]{0}', space=vmem, size = 0x8000, scoped, tag = 'output window, operand 0, single buffered']
    #allocation3 [shape = 's32[1]{0}', space=sflag, size = 0x4, scoped, tag = 'scoped memory for tpu_custom_call.1']
    %12 = vsyncpa [#allocation3], 0
    // Predicated region
    $region2: #{tpu_custom_call.1} parent=1 // pred_check
      _
    $region3: #{tpu_custom_call.1} parent=1 // pred_check_branch
      %14 = sbr.rel (0) target = $region5
    $region4: #{tpu_custom_call.1} parent=1 // pred_region
      _
    $region5: #{tpu_custom_call.1} parent=1 // pred_fallthru
      _
    // Predicated region
    $region6: #{tpu_custom_call.1} parent=1 // pred_check
      _
    $region7: #{tpu_custom_call.1} parent=1 // pred_check_branch
      %16 = sbr.rel (0) target = $region9
    $region8: #{tpu_custom_call.1} parent=1 // pred_region
      _
    $region9: #{tpu_custom_call.1} parent=1 // pred_fallthru
      _
    // Predicated region
    $region10: #{tpu_custom_call.1} parent=1 // pred_check
      _
    $region11: #{tpu_custom_call.1} parent=1 // pred_check_branch
      %18 = sbr.rel (0) target = $region13
    $region12: #{tpu_custom_call.1} parent=1 // pred_region
      _
    $region13: #{tpu_custom_call.1} parent=1 // pred_fallthru
      _
    // Predicated region
    $region14: #{tpu_custom_call.1} parent=1 // pred_check
      _
    $region15: #{tpu_custom_call.1} parent=1 // pred_check_branch
      %20 = sbr.rel (0) target = $region17
    $region16: #{tpu_custom_call.1} parent=1 // pred_region
      _
    $region17: #{tpu_custom_call.1} parent=1 // pred_fallthru
      _
    // Predicated region
    $region18: #{tpu_custom_call.1} parent=1 // pred_check
      _
    $region19: #{tpu_custom_call.1} parent=1 // pred_check_branch
      %22 = sbr.rel (0) target = $region21
    $region20: #{tpu_custom_call.1} parent=1 // pred_region
      _
    $region21: #{tpu_custom_call.1} parent=1 // pred_fallthru
      _
    // Predicated region
    $region22: #{tpu_custom_call.1} parent=1 // pred_check
      _
    $region23: #{tpu_custom_call.1} parent=1 // pred_check_branch
      %24 = sbr.rel (0) target = $region25
    $region24: #{tpu_custom_call.1} parent=1 // pred_region
      _
    $region25: #{tpu_custom_call.1} parent=1 // pred_fallthru
      _
    // Predicated region
    $region26: #{tpu_custom_call.1} parent=1 // pred_check
      _
    $region27: #{tpu_custom_call.1} parent=1 // pred_check_branch
      %26 = sbr.rel (0) target = $region29
    $region28: #{tpu_custom_call.1} parent=1 // pred_region
      _
    $region29: #{tpu_custom_call.1} parent=1 // pred_fallthru
      _
    %v28 = vld [vmem:[%s0] sm:$0xff]
    %v29 = vld [vmem:[%s0 + $0x8] sm:$0xff]
    %v30 = vld [vmem:[%s0 + $0x10] sm:$0xff]
    %v31 = vld [vmem:[%s0 + $0x18] sm:$0xff]
    %v32 = vld [vmem:[%s1] sm:$0xf]
    %v33 = vld [vmem:[%s1 + $0x4] sm:$0xf]
    %v34 = vld [vmem:[%s1 + $0x8] sm:$0xf]
    %v35 = vld [vmem:[%s1 + $0xc] sm:$0xf]
    %v36 = vld [vmem:[%s1 + $0x10] sm:$0xf]
    %v37 = vld [vmem:[%s1 + $0x14] sm:$0xf]
    %v38 = vld [vmem:[%s1 + $0x18] sm:$0xf]
    %v39 = vld [vmem:[%s1 + $0x1c] sm:$0xf]
    %v40 = vld [vmem:[%s1 + $0x20] sm:$0xf]
    %v41 = vld [vmem:[%s1 + $0x24] sm:$0xf]
    %v42 = vld [vmem:[%s1 + $0x28] sm:$0xf]
    %v43 = vld [vmem:[%s1 + $0x2c] sm:$0xf]
    %v44 = vld [vmem:[%s1 + $0x30] sm:$0xf]
    %v45 = vld [vmem:[%s1 + $0x34] sm:$0xf]
    %v46 = vld [vmem:[%s1 + $0x38] sm:$0xf]
    %v47 = vld [vmem:[%s1 + $0x3c] sm:$0xf]
    %v48 = vld [vmem:[%s1 + $0x40] sm:$0xf]
    %v49 = vld [vmem:[%s1 + $0x44] sm:$0xf]
    %v50 = vld [vmem:[%s1 + $0x48] sm:$0xf]
    %v51 = vld [vmem:[%s1 + $0x4c] sm:$0xf]
    %v52 = vld [vmem:[%s1 + $0x50] sm:$0xf]
    %v53 = vld [vmem:[%s1 + $0x54] sm:$0xf]
    %v54 = vld [vmem:[%s1 + $0x58] sm:$0xf]
    %v55 = vld [vmem:[%s1 + $0x5c] sm:$0xf]
    %v56 = vld [vmem:[%s1 + $0x60] sm:$0xf]
    %v57 = vld [vmem:[%s1 + $0x64] sm:$0xf]
    %v58 = vld [vmem:[%s1 + $0x68] sm:$0xf]
    %v59 = vld [vmem:[%s1 + $0x6c] sm:$0xf]
    %v60 = vld [vmem:[%s1 + $0x70] sm:$0xf]
    %v61 = vld [vmem:[%s1 + $0x74] sm:$0xf]
    %v62 = vld [vmem:[%s1 + $0x78] sm:$0xf]
    %v63 = vld [vmem:[%s1 + $0x7c] sm:$0xf]
    %v64 = vld [vmem:[%s1 + $0x80] sm:$0xf]
    %v65 = vld [vmem:[%s1 + $0x84] sm:$0xf]
    %v66 = vld [vmem:[%s1 + $0x88] sm:$0xf]
    %v67 = vld [vmem:[%s1 + $0x8c] sm:$0xf]
    %v68 = vld [vmem:[%s1 + $0x90] sm:$0xf]
    %v69 = vld [vmem:[%s1 + $0x94] sm:$0xf]
    %v70 = vld [vmem:[%s1 + $0x98] sm:$0xf]
    %v71 = vld [vmem:[%s1 + $0x9c] sm:$0xf]
    %v72 = vld [vmem:[%s1 + $0xa0] sm:$0xf]
    %v73 = vld [vmem:[%s1 + $0xa4] sm:$0xf]
    %v74 = vld [vmem:[%s1 + $0xa8] sm:$0xf]
    %v75 = vld [vmem:[%s1 + $0xac] sm:$0xf]
    %v76 = vld [vmem:[%s1 + $0xb0] sm:$0xf]
    %v77 = vld [vmem:[%s1 + $0xb4] sm:$0xf]
    %v78 = vld [vmem:[%s1 + $0xb8] sm:$0xf]
    %v79 = vld [vmem:[%s1 + $0xbc] sm:$0xf]
    %v80 = vld [vmem:[%s1 + $0xc0] sm:$0xf]
    %v81 = vld [vmem:[%s1 + $0xc4] sm:$0xf]
    %v82 = vld [vmem:[%s1 + $0xc8] sm:$0xf]
    %v83 = vld [vmem:[%s1 + $0xcc] sm:$0xf]
    %v84 = vld [vmem:[%s1 + $0xd0] sm:$0xf]
    %v85 = vld [vmem:[%s1 + $0xd4] sm:$0xf]
    %v86 = vld [vmem:[%s1 + $0xd8] sm:$0xf]
    %v87 = vld [vmem:[%s1 + $0xdc] sm:$0xf]
    %v88 = vld [vmem:[%s1 + $0xe0] sm:$0xf]
    %v89 = vld [vmem:[%s1 + $0xe4] sm:$0xf]
    %v90 = vld [vmem:[%s1 + $0xe8] sm:$0xf]
    %v91 = vld [vmem:[%s1 + $0xec] sm:$0xf]
    %v92 = vld [vmem:[%s1 + $0xf0] sm:$0xf]
    %v93 = vld [vmem:[%s1 + $0xf4] sm:$0xf]
    %v94 = vld [vmem:[%s1 + $0xf8] sm:$0xf]
    %v95 = vld [vmem:[%s1 + $0xfc] sm:$0xf]
    %v96 = vld [vmem:[%s1 + $0x100] sm:$0xf]
    %v97 = vld [vmem:[%s1 + $0x104] sm:$0xf]
    %v98 = vld [vmem:[%s1 + $0x108] sm:$0xf]
    %v99 = vld [vmem:[%s1 + $0x10c] sm:$0xf]
    %v100 = vld [vmem:[%s1 + $0x110] sm:$0xf]
    %v101 = vld [vmem:[%s1 + $0x114] sm:$0xf]
    %v102 = vld [vmem:[%s1 + $0x118] sm:$0xf]
    %v103 = vld [vmem:[%s1 + $0x11c] sm:$0xf]
    %v104 = vld [vmem:[%s1 + $0x120] sm:$0xf]
    %v105 = vld [vmem:[%s1 + $0x124] sm:$0xf]
    %v106 = vld [vmem:[%s1 + $0x128] sm:$0xf]
    %v107 = vld [vmem:[%s1 + $0x12c] sm:$0xf]
    %v108 = vld [vmem:[%s1 + $0x130] sm:$0xf]
    %v109 = vld [vmem:[%s1 + $0x134] sm:$0xf]
    %v110 = vld [vmem:[%s1 + $0x138] sm:$0xf]
    %v111 = vld [vmem:[%s1 + $0x13c] sm:$0xf]
    %v112 = vld [vmem:[%s1 + $0x140] sm:$0xf]
    %v113 = vld [vmem:[%s1 + $0x144] sm:$0xf]
    %v114 = vld [vmem:[%s1 + $0x148] sm:$0xf]
    %v115 = vld [vmem:[%s1 + $0x14c] sm:$0xf]
    %v116 = vld [vmem:[%s1 + $0x150] sm:$0xf]
    %v117 = vld [vmem:[%s1 + $0x154] sm:$0xf]
    %v118 = vld [vmem:[%s1 + $0x158] sm:$0xf]
    %v119 = vld [vmem:[%s1 + $0x15c] sm:$0xf]
    %v120 = vld [vmem:[%s1 + $0x160] sm:$0xf]
    %v121 = vld [vmem:[%s1 + $0x164] sm:$0xf]
    %v122 = vld [vmem:[%s1 + $0x168] sm:$0xf]
    %v123 = vld [vmem:[%s1 + $0x16c] sm:$0xf]
    %v124 = vld [vmem:[%s1 + $0x170] sm:$0xf]
    %v125 = vld [vmem:[%s1 + $0x174] sm:$0xf]
    %v126 = vld [vmem:[%s1 + $0x178] sm:$0xf]
    %v127 = vld [vmem:[%s1 + $0x17c] sm:$0xf]
    %v128 = vld [vmem:[%s1 + $0x180] sm:$0xf]
    %v129 = vld [vmem:[%s1 + $0x184] sm:$0xf]
    %v130 = vld [vmem:[%s1 + $0x188] sm:$0xf]
    %v131 = vld [vmem:[%s1 + $0x18c] sm:$0xf]
    %v132 = vld [vmem:[%s1 + $0x190] sm:$0xf]
    %v133 = vld [vmem:[%s1 + $0x194] sm:$0xf]
    %v134 = vld [vmem:[%s1 + $0x198] sm:$0xf]
    %v135 = vld [vmem:[%s1 + $0x19c] sm:$0xf]
    %v136 = vld [vmem:[%s1 + $0x1a0] sm:$0xf]
    %v137 = vld [vmem:[%s1 + $0x1a4] sm:$0xf]
    %v138 = vld [vmem:[%s1 + $0x1a8] sm:$0xf]
    %v139 = vld [vmem:[%s1 + $0x1ac] sm:$0xf]
    %v140 = vld [vmem:[%s1 + $0x1b0] sm:$0xf]
    %v141 = vld [vmem:[%s1 + $0x1b4] sm:$0xf]
    %v142 = vld [vmem:[%s1 + $0x1b8] sm:$0xf]
    %v143 = vld [vmem:[%s1 + $0x1bc] sm:$0xf]
    %v144 = vld [vmem:[%s1 + $0x1c0] sm:$0xf]
    %v145 = vld [vmem:[%s1 + $0x1c4] sm:$0xf]
    %v146 = vld [vmem:[%s1 + $0x1c8] sm:$0xf]
    %v147 = vld [vmem:[%s1 + $0x1cc] sm:$0xf]
    %v148 = vld [vmem:[%s1 + $0x1d0] sm:$0xf]
    %v149 = vld [vmem:[%s1 + $0x1d4] sm:$0xf]
    %v150 = vld [vmem:[%s1 + $0x1d8] sm:$0xf]
    %v151 = vld [vmem:[%s1 + $0x1dc] sm:$0xf]
    %v152 = vld [vmem:[%s1 + $0x1e0] sm:$0xf]
    %v153 = vld [vmem:[%s1 + $0x1e4] sm:$0xf]
    %v154 = vld [vmem:[%s1 + $0x1e8] sm:$0xf]
    %v155 = vld [vmem:[%s1 + $0x1ec] sm:$0xf]
    %v156 = vld [vmem:[%s1 + $0x1f0] sm:$0xf]
    %v157 = vld [vmem:[%s1 + $0x1f4] sm:$0xf]
    %v158 = vld [vmem:[%s1 + $0x1f8] sm:$0xf]
    %v159 = vld [vmem:[%s1 + $0x1fc] sm:$0xf]
    %v160 = vld [vmem:[%s2] sm:$0x1]
    %v162 = vperm.slane %v160, 0
    %v168 = vunpack.c.l.b16 %v28
    %v169 = vunpack.c.h.b16 %v28
    %v170 = vunpack.c.l.b16 %v29
    %v171 = vunpack.c.h.b16 %v29
    %v172 = vunpack.c.l.b16 %v30
    %v173 = vunpack.c.h.b16 %v30
    %v174 = vunpack.c.l.b16 %v31
    %v175 = vunpack.c.h.b16 %v31
    %v176 = vpack.c.b16 %v168, %v168
    %v177 = vpack.c.b16 %v169, %v169
    %v178 = vpack.c.b16 %v170, %v170
    %v179 = vpack.c.b16 %v171, %v171
    %v180 = vpack.c.b16 %v172, %v172
    %v181 = vpack.c.b16 %v173, %v173
    %v182 = vpack.c.b16 %v174, %v174
    %v183 = vpack.c.b16 %v175, %v175
    %v320 = vunpack.c.l.b16 %v32
    %v321 = vunpack.c.l.b16 %v33
    %v322 = vunpack.c.l.b16 %v34
    %v323 = vunpack.c.l.b16 %v35
    %v324 = vunpack.c.l.b16 %v36
    %v325 = vunpack.c.l.b16 %v37
    %v326 = vunpack.c.l.b16 %v38
    %v327 = vunpack.c.l.b16 %v39
    %v328 = vunpack.c.l.b16 %v40
    %v329 = vunpack.c.l.b16 %v41
    %v330 = vunpack.c.l.b16 %v42
    %v331 = vunpack.c.l.b16 %v43
    %v332 = vunpack.c.l.b16 %v44
    %v333 = vunpack.c.l.b16 %v45
    %v334 = vunpack.c.l.b16 %v46
    %v335 = vunpack.c.l.b16 %v47
    %v336 = vunpack.c.l.b16 %v48
    %v337 = vunpack.c.l.b16 %v49
    %v338 = vunpack.c.l.b16 %v50
    %v339 = vunpack.c.l.b16 %v51
    %v340 = vunpack.c.l.b16 %v52
    %v341 = vunpack.c.l.b16 %v53
    %v342 = vunpack.c.l.b16 %v54
    %v343 = vunpack.c.l.b16 %v55
    %v344 = vunpack.c.l.b16 %v56
    %v345 = vunpack.c.l.b16 %v57
    %v346 = vunpack.c.l.b16 %v58
    %v347 = vunpack.c.l.b16 %v59
    %v348 = vunpack.c.l.b16 %v60
    %v349 = vunpack.c.l.b16 %v61
    %v350 = vunpack.c.l.b16 %v62
    %v351 = vunpack.c.l.b16 %v63
    %v352 = vunpack.c.l.b16 %v64
    %v353 = vunpack.c.l.b16 %v65
    %v354 = vunpack.c.l.b16 %v66
    %v355 = vunpack.c.l.b16 %v67
    %v356 = vunpack.c.l.b16 %v68
    %v357 = vunpack.c.l.b16 %v69
    %v358 = vunpack.c.l.b16 %v70
    %v359 = vunpack.c.l.b16 %v71
    %v360 = vunpack.c.l.b16 %v72
    %v361 = vunpack.c.l.b16 %v73
    %v362 = vunpack.c.l.b16 %v74
    %v363 = vunpack.c.l.b16 %v75
    %v364 = vunpack.c.l.b16 %v76
    %v365 = vunpack.c.l.b16 %v77
    %v366 = vunpack.c.l.b16 %v78
    %v367 = vunpack.c.l.b16 %v79
    %v368 = vunpack.c.l.b16 %v80
    %v369 = vunpack.c.l.b16 %v81
    %v370 = vunpack.c.l.b16 %v82
    %v371 = vunpack.c.l.b16 %v83
    %v372 = vunpack.c.l.b16 %v84
    %v373 = vunpack.c.l.b16 %v85
    %v374 = vunpack.c.l.b16 %v86
    %v375 = vunpack.c.l.b16 %v87
    %v376 = vunpack.c.l.b16 %v88
    %v377 = vunpack.c.l.b16 %v89
    %v378 = vunpack.c.l.b16 %v90
    %v379 = vunpack.c.l.b16 %v91
    %v380 = vunpack.c.l.b16 %v92
    %v381 = vunpack.c.l.b16 %v93
    %v382 = vunpack.c.l.b16 %v94
    %v383 = vunpack.c.l.b16 %v95
    %v384 = vunpack.c.l.b16 %v96
    %v385 = vunpack.c.l.b16 %v97
    %v386 = vunpack.c.l.b16 %v98
    %v387 = vunpack.c.l.b16 %v99
    %v388 = vunpack.c.l.b16 %v100
    %v389 = vunpack.c.l.b16 %v101
    %v390 = vunpack.c.l.b16 %v102
    %v391 = vunpack.c.l.b16 %v103
    %v392 = vunpack.c.l.b16 %v104
    %v393 = vunpack.c.l.b16 %v105
    %v394 = vunpack.c.l.b16 %v106
    %v395 = vunpack.c.l.b16 %v107
    %v396 = vunpack.c.l.b16 %v108
    %v397 = vunpack.c.l.b16 %v109
    %v398 = vunpack.c.l.b16 %v110
    %v399 = vunpack.c.l.b16 %v111
    %v400 = vunpack.c.l.b16 %v112
    %v401 = vunpack.c.l.b16 %v113
    %v402 = vunpack.c.l.b16 %v114
    %v403 = vunpack.c.l.b16 %v115
    %v404 = vunpack.c.l.b16 %v116
    %v405 = vunpack.c.l.b16 %v117
    %v406 = vunpack.c.l.b16 %v118
    %v407 = vunpack.c.l.b16 %v119
    %v408 = vunpack.c.l.b16 %v120
    %v409 = vunpack.c.l.b16 %v121
    %v410 = vunpack.c.l.b16 %v122
    %v411 = vunpack.c.l.b16 %v123
    %v412 = vunpack.c.l.b16 %v124
    %v413 = vunpack.c.l.b16 %v125
    %v414 = vunpack.c.l.b16 %v126
    %v415 = vunpack.c.l.b16 %v127
    %v416 = vunpack.c.l.b16 %v128
    %v417 = vunpack.c.l.b16 %v129
    %v418 = vunpack.c.l.b16 %v130
    %v419 = vunpack.c.l.b16 %v131
    %v420 = vunpack.c.l.b16 %v132
    %v421 = vunpack.c.l.b16 %v133
    %v422 = vunpack.c.l.b16 %v134
    %v423 = vunpack.c.l.b16 %v135
    %v424 = vunpack.c.l.b16 %v136
    %v425 = vunpack.c.l.b16 %v137
    %v426 = vunpack.c.l.b16 %v138
    %v427 = vunpack.c.l.b16 %v139
    %v428 = vunpack.c.l.b16 %v140
    %v429 = vunpack.c.l.b16 %v141
    %v430 = vunpack.c.l.b16 %v142
    %v431 = vunpack.c.l.b16 %v143
    %v432 = vunpack.c.l.b16 %v144
    %v433 = vunpack.c.l.b16 %v145
    %v434 = vunpack.c.l.b16 %v146
    %v435 = vunpack.c.l.b16 %v147
    %v436 = vunpack.c.l.b16 %v148
    %v437 = vunpack.c.l.b16 %v149
    %v438 = vunpack.c.l.b16 %v150
    %v439 = vunpack.c.l.b16 %v151
    %v440 = vunpack.c.l.b16 %v152
    %v441 = vunpack.c.l.b16 %v153
    %v442 = vunpack.c.l.b16 %v154
    %v443 = vunpack.c.l.b16 %v155
    %v444 = vunpack.c.l.b16 %v156
    %v445 = vunpack.c.l.b16 %v157
    %v446 = vunpack.c.l.b16 %v158
    %v447 = vunpack.c.l.b16 %v159
    %v448 = vpack.c.b16 %v321, %v320
    %v449 = vpack.c.b16 %v323, %v322
    %v450 = vpack.c.b16 %v325, %v324
    %v451 = vpack.c.b16 %v327, %v326
    %v452 = vpack.c.b16 %v329, %v328
    %v453 = vpack.c.b16 %v331, %v330
    %v454 = vpack.c.b16 %v333, %v332
    %v455 = vpack.c.b16 %v335, %v334
    %v456 = vpack.c.b16 %v337, %v336
    %v457 = vpack.c.b16 %v339, %v338
    %v458 = vpack.c.b16 %v341, %v340
    %v459 = vpack.c.b16 %v343, %v342
    %v460 = vpack.c.b16 %v345, %v344
    %v461 = vpack.c.b16 %v347, %v346
    %v462 = vpack.c.b16 %v349, %v348
    %v463 = vpack.c.b16 %v351, %v350
    %v464 = vpack.c.b16 %v353, %v352
    %v465 = vpack.c.b16 %v355, %v354
    %v466 = vpack.c.b16 %v357, %v356
    %v467 = vpack.c.b16 %v359, %v358
    %v468 = vpack.c.b16 %v361, %v360
    %v469 = vpack.c.b16 %v363, %v362
    %v470 = vpack.c.b16 %v365, %v364
    %v471 = vpack.c.b16 %v367, %v366
    %v472 = vpack.c.b16 %v369, %v368
    %v473 = vpack.c.b16 %v371, %v370
    %v474 = vpack.c.b16 %v373, %v372
    %v475 = vpack.c.b16 %v375, %v374
    %v476 = vpack.c.b16 %v377, %v376
    %v477 = vpack.c.b16 %v379, %v378
    %v478 = vpack.c.b16 %v381, %v380
    %v479 = vpack.c.b16 %v383, %v382
    %v480 = vpack.c.b16 %v385, %v384
    %v481 = vpack.c.b16 %v387, %v386
    %v482 = vpack.c.b16 %v389, %v388
    %v483 = vpack.c.b16 %v391, %v390
    %v484 = vpack.c.b16 %v393, %v392
    %v485 = vpack.c.b16 %v395, %v394
    %v486 = vpack.c.b16 %v397, %v396
    %v487 = vpack.c.b16 %v399, %v398
    %v488 = vpack.c.b16 %v401, %v400
    %v489 = vpack.c.b16 %v403, %v402
    %v490 = vpack.c.b16 %v405, %v404
    %v491 = vpack.c.b16 %v407, %v406
    %v492 = vpack.c.b16 %v409, %v408
    %v493 = vpack.c.b16 %v411, %v410
    %v494 = vpack.c.b16 %v413, %v412
    %v495 = vpack.c.b16 %v415, %v414
    %v496 = vpack.c.b16 %v417, %v416
    %v497 = vpack.c.b16 %v419, %v418
    %v498 = vpack.c.b16 %v421, %v420
    %v499 = vpack.c.b16 %v423, %v422
    %v500 = vpack.c.b16 %v425, %v424
    %v501 = vpack.c.b16 %v427, %v426
    %v502 = vpack.c.b16 %v429, %v428
    %v503 = vpack.c.b16 %v431, %v430
    %v504 = vpack.c.b16 %v433, %v432
    %v505 = vpack.c.b16 %v435, %v434
    %v506 = vpack.c.b16 %v437, %v436
    %v507 = vpack.c.b16 %v439, %v438
    %v508 = vpack.c.b16 %v441, %v440
    %v509 = vpack.c.b16 %v443, %v442
    %v510 = vpack.c.b16 %v445, %v444
    %v511 = vpack.c.b16 %v447, %v446
    %576 = vmatpush.bf16.msra.mxu0 %v455
    %577 = vmatpush.bf16.msra.mxu0 %v454
    %578 = vmatpush.bf16.msra.mxu0 %v453
    %579 = vmatpush.bf16.msra.mxu0 %v452
    %580 = vmatpush.bf16.msra.mxu0 %v451
    %581 = vmatpush.bf16.msra.mxu0 %v450
    %582 = vmatpush.bf16.msra.mxu0 %v449
    %583 = vmatpush.bf16.msra.mxu0 %v448
    %584 = vmatmul.bf16.gmra.mxu0 %v176
    %v585 = vpop.f32.mrf.mxu0
    %v586 = vadd.f32 %v162, %v585
    %v587 = vpop.f32.mrf.mxu0
    %588 = vdwg.mxu0
    %589 = vmatpush.bf16.msra.mxu0 %v463
    %590 = vmatpush.bf16.msra.mxu0 %v462
    %591 = vmatpush.bf16.msra.mxu0 %v461
    %592 = vmatpush.bf16.msra.mxu0 %v460
    %593 = vmatpush.bf16.msra.mxu0 %v459
    %594 = vmatpush.bf16.msra.mxu0 %v458
    %595 = vmatpush.bf16.msra.mxu0 %v457
    %596 = vmatpush.bf16.msra.mxu0 %v456
    %597 = vmatmul.bf16.gmra.mxu0 %v177
    %v598 = vpop.f32.mrf.mxu0
    %v599 = vadd.f32 %v586, %v598
    %v600 = vpop.f32.mrf.mxu0
    %601 = vdwg.mxu0
    %602 = vmatpush.bf16.msra.mxu0 %v471
    %603 = vmatpush.bf16.msra.mxu0 %v470
    %604 = vmatpush.bf16.msra.mxu0 %v469
    %605 = vmatpush.bf16.msra.mxu0 %v468
    %606 = vmatpush.bf16.msra.mxu0 %v467
    %607 = vmatpush.bf16.msra.mxu0 %v466
    %608 = vmatpush.bf16.msra.mxu0 %v465
    %609 = vmatpush.bf16.msra.mxu0 %v464
    %610 = vmatmul.bf16.gmra.mxu0 %v178
    %v611 = vpop.f32.mrf.mxu0
    %v612 = vadd.f32 %v599, %v611
    %v613 = vpop.f32.mrf.mxu0
    %614 = vdwg.mxu0
    %615 = vmatpush.bf16.msra.mxu0 %v479
    %616 = vmatpush.bf16.msra.mxu0 %v478
    %617 = vmatpush.bf16.msra.mxu0 %v477
    %618 = vmatpush.bf16.msra.mxu0 %v476
    %619 = vmatpush.bf16.msra.mxu0 %v475
    %620 = vmatpush.bf16.msra.mxu0 %v474
    %621 = vmatpush.bf16.msra.mxu0 %v473
    %622 = vmatpush.bf16.msra.mxu0 %v472
    %623 = vmatmul.bf16.gmra.mxu0 %v179
    %v624 = vpop.f32.mrf.mxu0
    %v625 = vadd.f32 %v612, %v624
    %v626 = vpop.f32.mrf.mxu0
    %627 = vdwg.mxu0
    %628 = vmatpush.bf16.msra.mxu0 %v487
    %629 = vmatpush.bf16.msra.mxu0 %v486
    %630 = vmatpush.bf16.msra.mxu0 %v485
    %631 = vmatpush.bf16.msra.mxu0 %v484
    %632 = vmatpush.bf16.msra.mxu0 %v483
    %633 = vmatpush.bf16.msra.mxu0 %v482
    %634 = vmatpush.bf16.msra.mxu0 %v481
    %635 = vmatpush.bf16.msra.mxu0 %v480
    %636 = vmatmul.bf16.gmra.mxu0 %v180
    %v637 = vpop.f32.mrf.mxu0
    %v638 = vadd.f32 %v625, %v637
    %v639 = vpop.f32.mrf.mxu0
    %640 = vdwg.mxu0
    %641 = vmatpush.bf16.msra.mxu0 %v495
    %642 = vmatpush.bf16.msra.mxu0 %v494
    %643 = vmatpush.bf16.msra.mxu0 %v493
    %644 = vmatpush.bf16.msra.mxu0 %v492
    %645 = vmatpush.bf16.msra.mxu0 %v491
    %646 = vmatpush.bf16.msra.mxu0 %v490
    %647 = vmatpush.bf16.msra.mxu0 %v489
    %648 = vmatpush.bf16.msra.mxu0 %v488
    %649 = vmatmul.bf16.gmra.mxu0 %v181
    %v650 = vpop.f32.mrf.mxu0
    %v651 = vadd.f32 %v638, %v650
    %v652 = vpop.f32.mrf.mxu0
    %653 = vdwg.mxu0
    %654 = vmatpush.bf16.msra.mxu0 %v503
    %655 = vmatpush.bf16.msra.mxu0 %v502
    %656 = vmatpush.bf16.msra.mxu0 %v501
    %657 = vmatpush.bf16.msra.mxu0 %v500
    %658 = vmatpush.bf16.msra.mxu0 %v499
    %659 = vmatpush.bf16.msra.mxu0 %v498
    %660 = vmatpush.bf16.msra.mxu0 %v497
    %661 = vmatpush.bf16.msra.mxu0 %v496
    %662 = vmatmul.bf16.gmra.mxu0 %v182
    %v663 = vpop.f32.mrf.mxu0
    %v664 = vadd.f32 %v651, %v663
    %v665 = vpop.f32.mrf.mxu0
    %666 = vdwg.mxu0
    %667 = vmatpush.bf16.msra.mxu0 %v511
    %668 = vmatpush.bf16.msra.mxu0 %v510
    %669 = vmatpush.bf16.msra.mxu0 %v509
    %670 = vmatpush.bf16.msra.mxu0 %v508
    %671 = vmatpush.bf16.msra.mxu0 %v507
    %672 = vmatpush.bf16.msra.mxu0 %v506
    %673 = vmatpush.bf16.msra.mxu0 %v505
    %674 = vmatpush.bf16.msra.mxu0 %v504
    %675 = vmatmul.bf16.gmra.mxu0 %v183
    %v676 = vpop.f32.mrf.mxu0
    %v677 = vadd.f32 %v664, %v676
    %v678 = vpop.f32.mrf.mxu0
    %679 = vdwg.mxu0
    %v680 = vpack.c.bf16 %v677, %v677
    %v681 = vld [vmem:[%s3] sm:$0xf]
    %v682 = vld [vmem:[%s3 + $0x4] sm:$0xf]
    %v683 = vld [vmem:[%s3 + $0x8] sm:$0xf]
    %v684 = vld [vmem:[%s3 + $0xc] sm:$0xf]
    %v685 = vld [vmem:[%s4] sm:$0x1]
    %v687 = vperm.slane %v685, 0
    %v693 = vunpack.c.l.b16 %v681
    %v694 = vunpack.c.l.b16 %v682
    %v695 = vunpack.c.l.b16 %v683
    %v696 = vunpack.c.l.b16 %v684
    %v697 = vpack.c.b16 %v694, %v693
    %v698 = vpack.c.b16 %v696, %v695
    %vm701 = vcmask 261120
    %v703 = vsel %vm701, %v680, 0
    %705 = vmatpush.bf16.msra.mxu0 0
    %706 = vmatpush.bf16.msra.mxu0 0
    %707 = vmatpush.bf16.msra.mxu0 0
    %708 = vmatpush.bf16.msra.mxu0 0
    %709 = vmatpush.bf16.msra.mxu0 0
    %710 = vmatpush.bf16.msra.mxu0 0
    %711 = vmatpush.bf16.msra.mxu0 %v698
    %712 = vmatpush.bf16.msra.mxu0 %v697
    %713 = vmatmul.bf16.gmra.mxu0 %v703
    %v714 = vpop.f32.mrf.mxu0
    %v715 = vadd.f32 %v687, %v714
    %v716 = vpop.f32.mrf.mxu0
    %717 = vdwg.mxu0
    %v718 = vmax.f32 %v715, 0.0
    %v719 = vpack.c.bf16 %v718, %v718
    %v720 = vld [vmem:[%s5] sm:$0xff]
    %v721 = vld [vmem:[%s5 + $0x8] sm:$0xff]
    %v722 = vld [vmem:[%s5 + $0x10] sm:$0xff]
    %v723 = vld [vmem:[%s5 + $0x18] sm:$0xff]
    %v724 = vld [vmem:[%s5 + $0x20] sm:$0xff]
    %v725 = vld [vmem:[%s5 + $0x28] sm:$0xff]
    %v726 = vld [vmem:[%s5 + $0x30] sm:$0xff]
    %v727 = vld [vmem:[%s5 + $0x38] sm:$0xff]
    %v728 = vld [vmem:[%s5 + $0x40] sm:$0xff]
    %v729 = vld [vmem:[%s5 + $0x48] sm:$0xff]
    %v730 = vld [vmem:[%s5 + $0x50] sm:$0xff]
    %v731 = vld [vmem:[%s5 + $0x58] sm:$0xff]
    %v732 = vld [vmem:[%s5 + $0x60] sm:$0xff]
    %v733 = vld [vmem:[%s5 + $0x68] sm:$0xff]
    %v734 = vld [vmem:[%s5 + $0x70] sm:$0xff]
    %v735 = vld [vmem:[%s5 + $0x78] sm:$0xff]
    %v736 = vld [vmem:[%s5 + $0x80] sm:$0xff]
    %v737 = vld [vmem:[%s5 + $0x88] sm:$0xff]
    %v738 = vld [vmem:[%s5 + $0x90] sm:$0xff]
    %v739 = vld [vmem:[%s5 + $0x98] sm:$0xff]
    %v740 = vld [vmem:[%s5 + $0xa0] sm:$0xff]
    %v741 = vld [vmem:[%s5 + $0xa8] sm:$0xff]
    %v742 = vld [vmem:[%s5 + $0xb0] sm:$0xff]
    %v743 = vld [vmem:[%s5 + $0xb8] sm:$0xff]
    %v744 = vld [vmem:[%s5 + $0xc0] sm:$0xff]
    %v745 = vld [vmem:[%s5 + $0xc8] sm:$0xff]
    %v746 = vld [vmem:[%s5 + $0xd0] sm:$0xff]
    %v747 = vld [vmem:[%s5 + $0xd8] sm:$0xff]
    %v748 = vld [vmem:[%s5 + $0xe0] sm:$0xff]
    %v749 = vld [vmem:[%s5 + $0xe8] sm:$0xff]
    %v750 = vld [vmem:[%s5 + $0xf0] sm:$0xff]
    %v751 = vld [vmem:[%s5 + $0xf8] sm:$0xff]
    %v752 = vld [vmem:[%s5 + $0x100] sm:$0xff]
    %v753 = vld [vmem:[%s5 + $0x108] sm:$0xff]
    %v754 = vld [vmem:[%s5 + $0x110] sm:$0xff]
    %v755 = vld [vmem:[%s5 + $0x118] sm:$0xff]
    %v756 = vld [vmem:[%s5 + $0x120] sm:$0xff]
    %v757 = vld [vmem:[%s5 + $0x128] sm:$0xff]
    %v758 = vld [vmem:[%s5 + $0x130] sm:$0xff]
    %v759 = vld [vmem:[%s5 + $0x138] sm:$0xff]
    %v760 = vld [vmem:[%s5 + $0x140] sm:$0xff]
    %v761 = vld [vmem:[%s5 + $0x148] sm:$0xff]
    %v762 = vld [vmem:[%s5 + $0x150] sm:$0xff]
    %v763 = vld [vmem:[%s5 + $0x158] sm:$0xff]
    %v764 = vld [vmem:[%s5 + $0x160] sm:$0xff]
    %v765 = vld [vmem:[%s5 + $0x168] sm:$0xff]
    %v766 = vld [vmem:[%s5 + $0x170] sm:$0xff]
    %v767 = vld [vmem:[%s5 + $0x178] sm:$0xff]
    %v768 = vld [vmem:[%s5 + $0x180] sm:$0xff]
    %v769 = vld [vmem:[%s5 + $0x188] sm:$0xff]
    %v770 = vld [vmem:[%s5 + $0x190] sm:$0xff]
    %v771 = vld [vmem:[%s5 + $0x198] sm:$0xff]
    %v772 = vld [vmem:[%s5 + $0x1a0] sm:$0xff]
    %v773 = vld [vmem:[%s5 + $0x1a8] sm:$0xff]
    %v774 = vld [vmem:[%s5 + $0x1b0] sm:$0xff]
    %v775 = vld [vmem:[%s5 + $0x1b8] sm:$0xff]
    %v776 = vld [vmem:[%s5 + $0x1c0] sm:$0xff]
    %v777 = vld [vmem:[%s5 + $0x1c8] sm:$0xff]
    %v778 = vld [vmem:[%s5 + $0x1d0] sm:$0xff]
    %v779 = vld [vmem:[%s5 + $0x1d8] sm:$0xff]
    %v780 = vld [vmem:[%s5 + $0x1e0] sm:$0xff]
    %v781 = vld [vmem:[%s5 + $0x1e8] sm:$0xff]
    %v782 = vld [vmem:[%s5 + $0x1f0] sm:$0xff]
    %v783 = vld [vmem:[%s5 + $0x1f8] sm:$0xff]
    %v784 = vld [vmem:[%s6] sm:$0xff]
    %v786 = vperm.slane %v784, 0
    %v787 = vperm.slane %v784, 1
    %v788 = vperm.slane %v784, 2
    %v789 = vperm.slane %v784, 3
    %v790 = vperm.slane %v784, 4
    %v791 = vperm.slane %v784, 5
    %v792 = vperm.slane %v784, 6
    %v793 = vperm.slane %v784, 7
    %v866 = vunpack.c.l.b16 %v720
    %v867 = vunpack.c.h.b16 %v720
    %v868 = vunpack.c.l.b16 %v721
    %v869 = vunpack.c.h.b16 %v721
    %v870 = vunpack.c.l.b16 %v722
    %v871 = vunpack.c.h.b16 %v722
    %v872 = vunpack.c.l.b16 %v723
    %v873 = vunpack.c.h.b16 %v723
    %v874 = vunpack.c.l.b16 %v724
    %v875 = vunpack.c.h.b16 %v724
    %v876 = vunpack.c.l.b16 %v725
    %v877 = vunpack.c.h.b16 %v725
    %v878 = vunpack.c.l.b16 %v726
    %v879 = vunpack.c.h.b16 %v726
    %v880 = vunpack.c.l.b16 %v727
    %v881 = vunpack.c.h.b16 %v727
    %v882 = vunpack.c.l.b16 %v728
    %v883 = vunpack.c.h.b16 %v728
    %v884 = vunpack.c.l.b16 %v729
    %v885 = vunpack.c.h.b16 %v729
    %v886 = vunpack.c.l.b16 %v730
    %v887 = vunpack.c.h.b16 %v730
    %v888 = vunpack.c.l.b16 %v731
    %v889 = vunpack.c.h.b16 %v731
    %v890 = vunpack.c.l.b16 %v732
    %v891 = vunpack.c.h.b16 %v732
    %v892 = vunpack.c.l.b16 %v733
    %v893 = vunpack.c.h.b16 %v733
    %v894 = vunpack.c.l.b16 %v734
    %v895 = vunpack.c.h.b16 %v734
    %v896 = vunpack.c.l.b16 %v735
    %v897 = vunpack.c.h.b16 %v735
    %v898 = vunpack.c.l.b16 %v736
    %v899 = vunpack.c.h.b16 %v736
    %v900 = vunpack.c.l.b16 %v737
    %v901 = vunpack.c.h.b16 %v737
    %v902 = vunpack.c.l.b16 %v738
    %v903 = vunpack.c.h.b16 %v738
    %v904 = vunpack.c.l.b16 %v739
    %v905 = vunpack.c.h.b16 %v739
    %v906 = vunpack.c.l.b16 %v740
    %v907 = vunpack.c.h.b16 %v740
    %v908 = vunpack.c.l.b16 %v741
    %v909 = vunpack.c.h.b16 %v741
    %v910 = vunpack.c.l.b16 %v742
    %v911 = vunpack.c.h.b16 %v742
    %v912 = vunpack.c.l.b16 %v743
    %v913 = vunpack.c.h.b16 %v743
    %v914 = vunpack.c.l.b16 %v744
    %v915 = vunpack.c.h.b16 %v744
    %v916 = vunpack.c.l.b16 %v745
    %v917 = vunpack.c.h.b16 %v745
    %v918 = vunpack.c.l.b16 %v746
    %v919 = vunpack.c.h.b16 %v746
    %v920 = vunpack.c.l.b16 %v747
    %v921 = vunpack.c.h.b16 %v747
    %v922 = vunpack.c.l.b16 %v748
    %v923 = vunpack.c.h.b16 %v748
    %v924 = vunpack.c.l.b16 %v749
    %v925 = vunpack.c.h.b16 %v749
    %v926 = vunpack.c.l.b16 %v750
    %v927 = vunpack.c.h.b16 %v750
    %v928 = vunpack.c.l.b16 %v751
    %v929 = vunpack.c.h.b16 %v751
    %v930 = vunpack.c.l.b16 %v752
    %v931 = vunpack.c.h.b16 %v752
    %v932 = vunpack.c.l.b16 %v753
    %v933 = vunpack.c.h.b16 %v753
    %v934 = vunpack.c.l.b16 %v754
    %v935 = vunpack.c.h.b16 %v754
    %v936 = vunpack.c.l.b16 %v755
    %v937 = vunpack.c.h.b16 %v755
    %v938 = vunpack.c.l.b16 %v756
    %v939 = vunpack.c.h.b16 %v756
    %v940 = vunpack.c.l.b16 %v757
    %v941 = vunpack.c.h.b16 %v757
    %v942 = vunpack.c.l.b16 %v758
    %v943 = vunpack.c.h.b16 %v758
    %v944 = vunpack.c.l.b16 %v759
    %v945 = vunpack.c.h.b16 %v759
    %v946 = vunpack.c.l.b16 %v760
    %v947 = vunpack.c.h.b16 %v760
    %v948 = vunpack.c.l.b16 %v761
    %v949 = vunpack.c.h.b16 %v761
    %v950 = vunpack.c.l.b16 %v762
    %v951 = vunpack.c.h.b16 %v762
    %v952 = vunpack.c.l.b16 %v763
    %v953 = vunpack.c.h.b16 %v763
    %v954 = vunpack.c.l.b16 %v764
    %v955 = vunpack.c.h.b16 %v764
    %v956 = vunpack.c.l.b16 %v765
    %v957 = vunpack.c.h.b16 %v765
    %v958 = vunpack.c.l.b16 %v766
    %v959 = vunpack.c.h.b16 %v766
    %v960 = vunpack.c.l.b16 %v767
    %v961 = vunpack.c.h.b16 %v767
    %v962 = vunpack.c.l.b16 %v768
    %v963 = vunpack.c.h.b16 %v768
    %v964 = vunpack.c.l.b16 %v769
    %v965 = vunpack.c.h.b16 %v769
    %v966 = vunpack.c.l.b16 %v770
    %v967 = vunpack.c.h.b16 %v770
    %v968 = vunpack.c.l.b16 %v771
    %v969 = vunpack.c.h.b16 %v771
    %v970 = vunpack.c.l.b16 %v772
    %v971 = vunpack.c.h.b16 %v772
    %v972 = vunpack.c.l.b16 %v773
    %v973 = vunpack.c.h.b16 %v773
    %v974 = vunpack.c.l.b16 %v774
    %v975 = vunpack.c.h.b16 %v774
    %v976 = vunpack.c.l.b16 %v775
    %v977 = vunpack.c.h.b16 %v775
    %v978 = vunpack.c.l.b16 %v776
    %v979 = vunpack.c.h.b16 %v776
    %v980 = vunpack.c.l.b16 %v777
    %v981 = vunpack.c.h.b16 %v777
    %v982 = vunpack.c.l.b16 %v778
    %v983 = vunpack.c.h.b16 %v778
    %v984 = vunpack.c.l.b16 %v779
    %v985 = vunpack.c.h.b16 %v779
    %v986 = vunpack.c.l.b16 %v780
    %v987 = vunpack.c.h.b16 %v780
    %v988 = vunpack.c.l.b16 %v781
    %v989 = vunpack.c.h.b16 %v781
    %v990 = vunpack.c.l.b16 %v782
    %v991 = vunpack.c.h.b16 %v782
    %v992 = vunpack.c.l.b16 %v783
    %v993 = vunpack.c.h.b16 %v783
    %v994 = vpack.c.b16 %v874, %v866
    %v995 = vpack.c.b16 %v875, %v867
    %v996 = vpack.c.b16 %v876, %v868
    %v997 = vpack.c.b16 %v877, %v869
    %v998 = vpack.c.b16 %v878, %v870
    %v999 = vpack.c.b16 %v879, %v871
    %v1000 = vpack.c.b16 %v880, %v872
    %v1001 = vpack.c.b16 %v881, %v873
    %v1002 = vpack.c.b16 %v890, %v882
    %v1003 = vpack.c.b16 %v891, %v883
    %v1004 = vpack.c.b16 %v892, %v884
    %v1005 = vpack.c.b16 %v893, %v885
    %v1006 = vpack.c.b16 %v894, %v886
    %v1007 = vpack.c.b16 %v895, %v887
    %v1008 = vpack.c.b16 %v896, %v888
    %v1009 = vpack.c.b16 %v897, %v889
    %v1010 = vpack.c.b16 %v906, %v898
    %v1011 = vpack.c.b16 %v907, %v899
    %v1012 = vpack.c.b16 %v908, %v900
    %v1013 = vpack.c.b16 %v909, %v901
    %v1014 = vpack.c.b16 %v910, %v902
    %v1015 = vpack.c.b16 %v911, %v903
    %v1016 = vpack.c.b16 %v912, %v904
    %v1017 = vpack.c.b16 %v913, %v905
    %v1018 = vpack.c.b16 %v922, %v914
    %v1019 = vpack.c.b16 %v923, %v915
    %v1020 = vpack.c.b16 %v924, %v916
    %v1021 = vpack.c.b16 %v925, %v917
    %v1022 = vpack.c.b16 %v926, %v918
    %v1023 = vpack.c.b16 %v927, %v919
    %v1024 = vpack.c.b16 %v928, %v920
    %v1025 = vpack.c.b16 %v929, %v921
    %v1026 = vpack.c.b16 %v938, %v930
    %v1027 = vpack.c.b16 %v939, %v931
    %v1028 = vpack.c.b16 %v940, %v932
    %v1029 = vpack.c.b16 %v941, %v933
    %v1030 = vpack.c.b16 %v942, %v934
    %v1031 = vpack.c.b16 %v943, %v935
    %v1032 = vpack.c.b16 %v944, %v936
    %v1033 = vpack.c.b16 %v945, %v937
    %v1034 = vpack.c.b16 %v954, %v946
    %v1035 = vpack.c.b16 %v955, %v947
    %v1036 = vpack.c.b16 %v956, %v948
    %v1037 = vpack.c.b16 %v957, %v949
    %v1038 = vpack.c.b16 %v958, %v950
    %v1039 = vpack.c.b16 %v959, %v951
    %v1040 = vpack.c.b16 %v960, %v952
    %v1041 = vpack.c.b16 %v961, %v953
    %v1042 = vpack.c.b16 %v970, %v962
    %v1043 = vpack.c.b16 %v971, %v963
    %v1044 = vpack.c.b16 %v972, %v964
    %v1045 = vpack.c.b16 %v973, %v965
    %v1046 = vpack.c.b16 %v974, %v966
    %v1047 = vpack.c.b16 %v975, %v967
    %v1048 = vpack.c.b16 %v976, %v968
    %v1049 = vpack.c.b16 %v977, %v969
    %v1050 = vpack.c.b16 %v986, %v978
    %v1051 = vpack.c.b16 %v987, %v979
    %v1052 = vpack.c.b16 %v988, %v980
    %v1053 = vpack.c.b16 %v989, %v981
    %v1054 = vpack.c.b16 %v990, %v982
    %v1055 = vpack.c.b16 %v991, %v983
    %v1056 = vpack.c.b16 %v992, %v984
    %v1057 = vpack.c.b16 %v993, %v985
    %1122 = vmatpush.bf16.msra.mxu0 %v1050
    %1123 = vmatpush.bf16.msra.mxu0 %v1042
    %1124 = vmatpush.bf16.msra.mxu0 %v1034
    %1125 = vmatpush.bf16.msra.mxu0 %v1026
    %1126 = vmatpush.bf16.msra.mxu0 %v1018
    %1127 = vmatpush.bf16.msra.mxu0 %v1010
    %1128 = vmatpush.bf16.msra.mxu0 %v1002
    %1129 = vmatpush.bf16.msra.mxu0 %v994
    %1130 = vmatmul.bf16.gmra.mxu0 %v719
    %v1131 = vpop.f32.mrf.mxu0
    %v1132 = vadd.f32 %v786, %v1131
    %v1133 = vpop.f32.mrf.mxu0
    %1134 = vdwg.mxu0
    %1135 = vmatpush.bf16.msra.mxu0 %v1051
    %1136 = vmatpush.bf16.msra.mxu0 %v1043
    %1137 = vmatpush.bf16.msra.mxu0 %v1035
    %1138 = vmatpush.bf16.msra.mxu0 %v1027
    %1139 = vmatpush.bf16.msra.mxu0 %v1019
    %1140 = vmatpush.bf16.msra.mxu0 %v1011
    %1141 = vmatpush.bf16.msra.mxu0 %v1003
    %1142 = vmatpush.bf16.msra.mxu0 %v995
    %1143 = vmatmul.bf16.gmra.mxu0 %v719
    %v1144 = vpop.f32.mrf.mxu0
    %v1145 = vadd.f32 %v787, %v1144
    %v1146 = vpop.f32.mrf.mxu0
    %1147 = vdwg.mxu0
    %1148 = vmatpush.bf16.msra.mxu0 %v1052
    %1149 = vmatpush.bf16.msra.mxu0 %v1044
    %1150 = vmatpush.bf16.msra.mxu0 %v1036
    %1151 = vmatpush.bf16.msra.mxu0 %v1028
    %1152 = vmatpush.bf16.msra.mxu0 %v1020
    %1153 = vmatpush.bf16.msra.mxu0 %v1012
    %1154 = vmatpush.bf16.msra.mxu0 %v1004
    %1155 = vmatpush.bf16.msra.mxu0 %v996
    %1156 = vmatmul.bf16.gmra.mxu0 %v719
    %v1157 = vpop.f32.mrf.mxu0
    %v1158 = vadd.f32 %v788, %v1157
    %v1159 = vpop.f32.mrf.mxu0
    %1160 = vdwg.mxu0
    %1161 = vmatpush.bf16.msra.mxu0 %v1053
    %1162 = vmatpush.bf16.msra.mxu0 %v1045
    %1163 = vmatpush.bf16.msra.mxu0 %v1037
    %1164 = vmatpush.bf16.msra.mxu0 %v1029
    %1165 = vmatpush.bf16.msra.mxu0 %v1021
    %1166 = vmatpush.bf16.msra.mxu0 %v1013
    %1167 = vmatpush.bf16.msra.mxu0 %v1005
    %1168 = vmatpush.bf16.msra.mxu0 %v997
    %1169 = vmatmul.bf16.gmra.mxu0 %v719
    %v1170 = vpop.f32.mrf.mxu0
    %v1171 = vadd.f32 %v789, %v1170
    %v1172 = vpop.f32.mrf.mxu0
    %1173 = vdwg.mxu0
    %1174 = vmatpush.bf16.msra.mxu0 %v1054
    %1175 = vmatpush.bf16.msra.mxu0 %v1046
    %1176 = vmatpush.bf16.msra.mxu0 %v1038
    %1177 = vmatpush.bf16.msra.mxu0 %v1030
    %1178 = vmatpush.bf16.msra.mxu0 %v1022
    %1179 = vmatpush.bf16.msra.mxu0 %v1014
    %1180 = vmatpush.bf16.msra.mxu0 %v1006
    %1181 = vmatpush.bf16.msra.mxu0 %v998
    %1182 = vmatmul.bf16.gmra.mxu0 %v719
    %v1183 = vpop.f32.mrf.mxu0
    %v1184 = vadd.f32 %v790, %v1183
    %v1185 = vpop.f32.mrf.mxu0
    %1186 = vdwg.mxu0
    %1187 = vmatpush.bf16.msra.mxu0 %v1055
    %1188 = vmatpush.bf16.msra.mxu0 %v1047
    %1189 = vmatpush.bf16.msra.mxu0 %v1039
    %1190 = vmatpush.bf16.msra.mxu0 %v1031
    %1191 = vmatpush.bf16.msra.mxu0 %v1023
    %1192 = vmatpush.bf16.msra.mxu0 %v1015
    %1193 = vmatpush.bf16.msra.mxu0 %v1007
    %1194 = vmatpush.bf16.msra.mxu0 %v999
    %1195 = vmatmul.bf16.gmra.mxu0 %v719
    %v1196 = vpop.f32.mrf.mxu0
    %v1197 = vadd.f32 %v791, %v1196
    %v1198 = vpop.f32.mrf.mxu0
    %1199 = vdwg.mxu0
    %1200 = vmatpush.bf16.msra.mxu0 %v1056
    %1201 = vmatpush.bf16.msra.mxu0 %v1048
    %1202 = vmatpush.bf16.msra.mxu0 %v1040
    %1203 = vmatpush.bf16.msra.mxu0 %v1032
    %1204 = vmatpush.bf16.msra.mxu0 %v1024
    %1205 = vmatpush.bf16.msra.mxu0 %v1016
    %1206 = vmatpush.bf16.msra.mxu0 %v1008
    %1207 = vmatpush.bf16.msra.mxu0 %v1000
    %1208 = vmatmul.bf16.gmra.mxu0 %v719
    %v1209 = vpop.f32.mrf.mxu0
    %v1210 = vadd.f32 %v792, %v1209
    %v1211 = vpop.f32.mrf.mxu0
    %1212 = vdwg.mxu0
    %1213 = vmatpush.bf16.msra.mxu0 %v1057
    %1214 = vmatpush.bf16.msra.mxu0 %v1049
    %1215 = vmatpush.bf16.msra.mxu0 %v1041
    %1216 = vmatpush.bf16.msra.mxu0 %v1033
    %1217 = vmatpush.bf16.msra.mxu0 %v1025
    %1218 = vmatpush.bf16.msra.mxu0 %v1017
    %1219 = vmatpush.bf16.msra.mxu0 %v1009
    %1220 = vmatpush.bf16.msra.mxu0 %v1001
    %1221 = vmatmul.bf16.gmra.mxu0 %v719
    %v1222 = vpop.f32.mrf.mxu0
    %v1223 = vadd.f32 %v793, %v1222
    %v1224 = vpop.f32.mrf.mxu0
    %1225 = vdwg.mxu0
    %1226 = vst [vmem:[#allocation2] sm:$0xff] %v1132
    %1227 = vst [vmem:[#allocation2 + $0x8] sm:$0xff] %v1145
    %1228 = vst [vmem:[#allocation2 + $0x10] sm:$0xff] %v1158
    %1229 = vst [vmem:[#allocation2 + $0x18] sm:$0xff] %v1171
    %1230 = vst [vmem:[#allocation2 + $0x20] sm:$0xff] %v1184
    %1231 = vst [vmem:[#allocation2 + $0x28] sm:$0xff] %v1197
    %1232 = vst [vmem:[#allocation2 + $0x30] sm:$0xff] %v1210
    %1233 = vst [vmem:[#allocation2 + $0x38] sm:$0xff] %v1223
    // Predicated region
    $region30: #{tpu_custom_call.1} parent=1 // pred_check
      _
    $region31: #{tpu_custom_call.1} parent=1 // pred_check_branch
      %1235 = sbr.rel (0) target = $region33
    $region32: #{tpu_custom_call.1} parent=1 // pred_region
      %1237 = vsyncadd [#allocation3], 0
      %s1239 = sshll.u32 [#allocation2], 4
      %s1240 = int_to_ptr.vmem [resolvable:$true] %s1239
      %s1241 = sshll.u32 %s7, 4
      %s1242 = int_to_ptr.hbm [resolvable:$true] %s1241
      %1244 = dma.vmem_to_hbm [thread:$0]  %s1240, 1024, %s1242, [#allocation3]
    $region33: #{tpu_custom_call.1} parent=1 // pred_fallthru
      _
    // Predicated region
    $region34: #{tpu_custom_call.1} parent=1 // pred_check
      _
    $region35: #{tpu_custom_call.1} parent=1 // pred_check_branch
      %1246 = sbr.rel (0) target = $region37
    $region36: #{tpu_custom_call.1} parent=1 // pred_region
      %1248 = dma.done [#allocation3], 1024
    $region37: #{tpu_custom_call.1} parent=1 // pred_fallthru
      _
    %1249 = vsyncpa [#allocation3], 1

</llo_original>
